<compile_context>
chip_gen: v6e
topology: v6e:2x2x1
jax: 0.10.0
libtpu: 0.0.40
codegen_flags: <defaults>
</compile_context>

<pallas_src>
import numpy as np
import jax
import jax.numpy as jnp
from jax.experimental import pallas as pl
from jax.experimental.pallas import tpu as pltpu


# ----------------------------------------------------------------------------
# pltpu.roll direction guard (tiny one-off probe so the conv tap shifts are
# correct regardless of the roll sign convention).
# ----------------------------------------------------------------------------
def _roll_probe_kernel(x_ref, o_ref):
    o_ref[...] = pltpu.roll(x_ref[...], 1, 1)


def detect_roll_sign():
    """Return s such that pltpu.roll(a, (s*off) % n, axis)[..., p] == a[..., (p+off) % n]."""
    x = jnp.arange(8 * 128, dtype=jnp.float32).reshape(8, 128)
    y = pl.pallas_call(
        _roll_probe_kernel,
        out_shape=jax.ShapeDtypeStruct((8, 128), jnp.float32),
    )(x)
    return -1 if bool(jnp.array_equal(y, jnp.roll(x, 1, axis=1))) else 1


# ----------------------------------------------------------------------------
# Fused forward kernel
# ----------------------------------------------------------------------------
def make_fused_kernel(layer_meta, N, H, W, roll_sign):
    S = N * H * W      # batch folded into the lane (matmul-N) axis
    HW = H * W

    def kernel(*refs):
        it = iter(refs)
        x_ref = next(it)
        layer_refs = []
        for meta in layer_meta:
            lr = dict(w1=next(it), sc1=next(it), sh1=next(it),
                      w2=next(it), sc2=next(it), sh2=next(it))
            if meta["has_proj"]:
                lr["wp"] = next(it)
                lr["bp"] = next(it)
            layer_refs.append(lr)
        poolT_ref = next(it)
        w1h_ref = next(it)
        b1h_ref = next(it)
        w2h_ref = next(it)
        b2h_ref = next(it)
        o_ref = next(it)

        # --- 3x3 tap validity masks (shared by every conv; H, W fixed). ---
        pos = jax.lax.broadcasted_iota(jnp.int32, (1, S), 1)
        i_idx = (pos // W) % H
        j_idx = pos % W
        masks = []
        for t in range(9):
            di, dj = t // 3 - 1, t % 3 - 1
            if di == 0 and dj == 0:
                masks.append(None)
            else:
                masks.append((i_idx + di >= 0) & (i_idx + di < H) &
                             (j_idx + dj >= 0) & (j_idx + dj < W))

        def conv3x3_bn_relu(a, w_ref, sc_ref, sh_ref):
            # a: (Cin, S) f32.  3x3/pad=1 conv as 9 shifted bf16 matmuls with a
            # shared f32 accumulator; folded-BN scale/shift + ReLU in f32.
            cout = w_ref.shape[1]
            acc = jnp.zeros((cout, S), jnp.float32)
            for t in range(9):
                di, dj = t // 3 - 1, t % 3 - 1
                off = di * W + dj
                if off == 0:
                    tap = a
                else:
                    tap = pltpu.roll(a, (roll_sign * off) % S, axis=1)
                    tap = jnp.where(masks[t], tap, 0.0)       # zero padding
                acc = acc + jnp.dot(w_ref[t], tap.astype(jnp.bfloat16),
                                    preferred_element_type=jnp.float32)
            return jnp.maximum(acc * sc_ref[...] + sh_ref[...], 0.0)

        # --- residual conv blocks ---
        cur = x_ref[...]                                      # (C0, S) f32
        for meta, lr in zip(layer_meta, layer_refs):
            h1 = conv3x3_bn_relu(cur, lr["w1"], lr["sc1"], lr["sh1"])
            y = conv3x3_bn_relu(h1, lr["w2"], lr["sc2"], lr["sh2"])
            if meta["has_proj"]:                              # 1x1 conv projection
                r = jnp.dot(lr["wp"][...], cur.astype(jnp.bfloat16),
                            preferred_element_type=jnp.float32) + lr["bp"][...]
            else:                                             # nn.Identity: skip matmul
                r = cur
            cur = y + r                                       # (Cout, S) f32

        # --- classifier: AdaptiveAvgPool2d(7,7) -> Flatten -> Linear -> ReLU
        #     -> Dropout(eval: identity) -> Linear, fused. ---
        c_final = cur.shape[0]
        hidden = w1h_ref.shape[2]
        for n in range(N):
            a_n = cur[:, n * HW:(n + 1) * HW]                 # (C, HW); HW % 128 == 0
            pooled = jnp.dot(a_n, poolT_ref[...],
                             preferred_element_type=jnp.float32)      # (C, 49)
            h = jnp.zeros((1, hidden), jnp.float32)
            for c in range(c_final):      # == PyTorch flatten(C,7,7) @ W1 (rows c*49+k)
                h = h + jnp.dot(pooled[c:c + 1, :].astype(jnp.bfloat16),
                                w1h_ref[c], preferred_element_type=jnp.float32)
            h = jnp.maximum(h + b1h_ref[...], 0.0)
            logits = jnp.dot(h.astype(jnp.bfloat16), w2h_ref[...],
                             preferred_element_type=jnp.float32) + b2h_ref[...]
            o_ref[pl.ds(n, 1), :] = logits

    return kernel


def build_forward(layer_meta, N, H, W, num_classes, roll_sign):
    S = N * H * W
    kernel = make_fused_kernel(layer_meta, N, H, W, roll_sign)

    def fwd(x_nchw, flat_params):
        C0 = x_nchw.shape[1]
        # NCHW -> channel-major (C, N*H*W): batch folded into the lane axis.
        x2d = jnp.transpose(x_nchw.astype(jnp.float32),
                            (1, 0, 2, 3)).reshape(C0, S)
        args = (x2d,) + tuple(flat_params)
        vmem = pl.BlockSpec(memory_space=pltpu.MemorySpace.VMEM)
        return pl.pallas_call(
            kernel,
            out_shape=jax.ShapeDtypeStruct((N, num_classes), jnp.float32),
            in_specs=[vmem] * len(args),
            out_specs=vmem,
        )(*args)

    return jax.jit(fwd)


# ----------------------------------------------------------------------------
# Parameter construction / folding (plain JAX / numpy, one-time prep)
# ----------------------------------------------------------------------------
def fold_bn(conv_bias, gamma, beta, mean, var, eps=1e-5):
    """Fold conv bias + eval-mode BatchNorm into per-channel scale / shift."""
    scale = gamma / jnp.sqrt(var + eps)
    shift = (conv_bias - mean) * scale + beta
    return scale, shift


def adaptive_pool_matrix(in_size, out_size):
    """Row-stochastic matrix (out, in) reproducing AdaptiveAvgPool1d bins."""
    P = np.zeros((out_size, in_size), dtype=np.float32)
    for i in range(out_size):
        start = (i * in_size) // out_size
        end = -((-(i + 1) * in_size) // out_size)   # ceil
        P[i, start:end] = 1.0 / (end - start)
    return P


def conv_taps(w_oihw):
    """(Cout, Cin, 3, 3) -> (9, Cout, Cin) bf16, tap index t = kh*3 + kw."""
    cout, cin = w_oihw.shape[0], w_oihw.shape[1]
    return jnp.transpose(w_oihw, (2, 3, 0, 1)).reshape(9, cout, cin).astype(jnp.bfloat16)


def init_params(key, layer_configs, num_classes, H, W, hidden=512):
    flat, meta = [], []
    for cin, cout in layer_configs:
        mid = cout * 2
        key, *ks = jax.random.split(key, 13)
        w1 = jax.random.normal(ks[0], (mid, cin, 3, 3), jnp.float32) * 0.1
        b1 = 0.05 * jax.random.normal(ks[1], (mid,), jnp.float32)
        g1 = 1.0 + 0.1 * jax.random.normal(ks[2], (mid,), jnp.float32)
        be1 = 0.05 * jax.random.normal(ks[3], (mid,), jnp.float32)
        m1 = 0.05 * jax.random.normal(ks[4], (mid,), jnp.float32)
        v1 = 0.5 + jnp.abs(jax.random.normal(ks[5], (mid,), jnp.float32))
        w2 = jax.random.normal(ks[6], (cout, mid, 3, 3), jnp.float32) * 0.1
        b2 = 0.05 * jax.random.normal(ks[7], (cout,), jnp.float32)
        g2 = 1.0 + 0.1 * jax.random.normal(ks[8], (cout,), jnp.float32)
        be2 = 0.05 * jax.random.normal(ks[9], (cout,), jnp.float32)
        m2 = 0.05 * jax.random.normal(ks[10], (cout,), jnp.float32)
        v2 = 0.5 + jnp.abs(jax.random.normal(ks[11], (cout,), jnp.float32))

        sc1, sh1 = fold_bn(b1, g1, be1, m1, v1)
        sc2, sh2 = fold_bn(b2, g2, be2, m2, v2)

        flat += [conv_taps(w1), sc1.reshape(mid, 1), sh1.reshape(mid, 1),
                 conv_taps(w2), sc2.reshape(cout, 1), sh2.reshape(cout, 1)]

        has_proj = cin != cout
        if has_proj:
            key, kp, kb = jax.random.split(key, 3)
            wp = jax.random.normal(kp, (cout, cin), jnp.float32) * 0.1
            bp = 0.05 * jax.random.normal(kb, (cout,), jnp.float32)
            flat += [wp.astype(jnp.bfloat16), bp.reshape(cout, 1)]
        meta.append({"has_proj": has_proj})

    c_final = layer_configs[-1][1]
    key, k1, k2, k3, k4 = jax.random.split(key, 5)
    w1h = 0.05 * jax.random.normal(k1, (c_final * 49, hidden), jnp.float32)
    b1h = 0.05 * jax.random.normal(k2, (hidden,), jnp.float32)
    w2h = 0.05 * jax.random.normal(k3, (hidden, num_classes), jnp.float32)
    b2h = 0.05 * jax.random.normal(k4, (num_classes,), jnp.float32)

    # AdaptiveAvgPool2d((7,7)) as a fixed (H*W, 49) matrix; separate H / W bin
    # matrices so non-square inputs are handled correctly.
    pool2d = np.kron(adaptive_pool_matrix(H, 7), adaptive_pool_matrix(W, 7))  # (49, H*W)
    flat += [
        jnp.asarray(pool2d.T),                                        # (H*W, 49) f32
        w1h.reshape(c_final, 49, hidden).astype(jnp.bfloat16),        # rows ordered c*49 + k
        b1h.reshape(1, hidden),
        w2h.astype(jnp.bfloat16),
        b2h.reshape(1, num_classes),
    ]
    return tuple(flat), meta


# ----------------------------------------------------------------------------
if __name__ == "__main__":
    layer_configs = [(4, 8), (8, 8), (8, 16)]   # exercises both 1x1 proj and identity
    num_classes = 10
    N, C0, H, W = 2, 4, 16, 16

    key = jax.random.PRNGKey(0)
    kx, kp = jax.random.split(key)
    x = jax.random.normal(kx, (N, C0, H, W), jnp.float32)   # NCHW like PyTorch

    roll_sign = detect_roll_sign()
    flat_params, meta = init_params(kp, layer_configs, num_classes, H, W)
    forward = build_forward(meta, N, H, W, num_classes, roll_sign)

    logits = forward(x, flat_params)
    jax.block_until_ready(logits)
    assert logits.shape == (N, num_classes)
    assert bool(jnp.all(jnp.isfinite(logits)))
    print("KERNEL_OK")
</pallas_src>

<mosaic_0001>
module attributes {stable_mosaic.version = 11 : i64} {
  func.func @_roll_probe_kernel(%arg0: memref<8x128xf32, #tpu.memory_space<vmem>>, %arg1: memref<8x128xf32, #tpu.memory_space<vmem>>) attributes {dimension_semantics = [], scalar_prefetch = 0 : i64, scratch_operands = 0 : i64, tpu.core_type = #tpu.core_type<tc>} {
    %c0 = arith.constant 0 : index
    %c0_0 = arith.constant 0 : index
    %0 = vector.load %arg0[%c0, %c0_0] : memref<8x128xf32, #tpu.memory_space<vmem>>, vector<8x128xf32>
    %c1_i32 = arith.constant 1 : i32
    %1 = tpu.dynamic_rotate %0 by %c1_i32 dim 1 : vector<8x128xf32>, i32 -> vector<8x128xf32>
    %c0_1 = arith.constant 0 : index
    %c0_2 = arith.constant 0 : index
    %2 = vector.load %arg1[%c0_1, %c0_2] : memref<8x128xf32, #tpu.memory_space<vmem>>, vector<8x128xf32>
    tpu.vector_store %arg1[%c0_1, %c0_2], %1 {strides = array<i32>} : memref<8x128xf32, #tpu.memory_space<vmem>>, vector<8x128xf32>,
    return
  }
}

</mosaic_0001>

<llo_original>
// kernel: tpu_custom_call.1
$region0: #{tpu_custom_call.1}
  #allocation0 [shape = 'u32[]', space=smem, size = 0x4, offset = 0x4, fixed_abs, tag = 'smem constant byte address 0x4 - core index']
  #allocation1 [shape = 'u32[144,128]{1,0:T(1,128)}', space=vmem, size = 0x12000, scoped, tag = 'internal scratch']
  %s0 = inlined_call_operand.hbm [shape: f32[8,128], index: 0, kind: input, shape index: {}]
  %s1 = inlined_call_operand.hbm [shape: f32[8,128], index: 1, kind: output, shape index: {}]
  %s2 = sld [smem:[#allocation0]]
  $region18: #{tpu_custom_call.1} parent=0
    _
  %s4 = ssub.s32 1, %s2
  %s5 = scalar_select 0, %s4, %s2
  $region1: #{tpu_custom_call.1} parent=0
    #allocation2 [shape = 'u8[4096]{0}', space=vmem, size = 0x1000, scoped, tag = 'input window, operand 0, single buffered']
    #allocation3 [shape = 's32[1]{0}', space=sflag, size = 0x4, scoped, tag = 'scoped memory for tpu_custom_call.1']
    #allocation4 [shape = 's32[1]{0}', space=sflag, size = 0x4, scoped, tag = 'scoped memory for tpu_custom_call.1']
    #allocation5 [shape = 'u8[4096]{0}', space=vmem, size = 0x1000, scoped, tag = 'output window, operand 0, single buffered']
    %6 = vsyncpa [#allocation3], 0
    %7 = vsyncpa [#allocation4], 0
    // Predicated region
    $region2: #{tpu_custom_call.1} parent=1 // pred_check
      _
    $region3: #{tpu_custom_call.1} parent=1 // pred_check_branch
      %9 = sbr.rel (0) target = $region5
    $region4: #{tpu_custom_call.1} parent=1 // pred_region
      %s11 = ssub.s32 128, 128
      %12 = vsyncadd [#allocation3], %s11
      %s14 = sshll.u32 [#allocation2], 4
      %s15 = int_to_ptr.vmem [resolvable:$true] %s14
      %17 = dma.hbm_to_vmem [thread:$0]  %s0, 128, %s15, [#allocation3]
    $region5: #{tpu_custom_call.1} parent=1 // pred_fallthru
      _
    // Predicated region
    $region6: #{tpu_custom_call.1} parent=1 // pred_check
      _
    $region7: #{tpu_custom_call.1} parent=1 // pred_check_branch
      %19 = sbr.rel (0) target = $region9
    $region8: #{tpu_custom_call.1} parent=1 // pred_region
      %20 = dma.done [#allocation3], 128
    $region9: #{tpu_custom_call.1} parent=1 // pred_fallthru
      _
    %v21 = vld [vmem:[#allocation2] sm:$0xff]
    %22 = vrot.lane.b32.xlu0 %v21, 1
    %v23 = vpop.permute.xlu0 %22
    %24 = vst [vmem:[#allocation5] sm:$0xff] %v23
    // Predicated region
    $region10: #{tpu_custom_call.1} parent=1 // pred_check
      _
    $region11: #{tpu_custom_call.1} parent=1 // pred_check_branch
      %26 = sbr.rel (0) target = $region13
    $region12: #{tpu_custom_call.1} parent=1 // pred_region
      %s28 = ssub.s32 128, 128
      %29 = vsyncadd [#allocation4], %s28
      %s31 = sshll.u32 [#allocation5], 4
      %s32 = int_to_ptr.vmem [resolvable:$true] %s31
      %34 = dma.vmem_to_hbm [thread:$0]  %s32, 128, %s1, [#allocation4]
    $region13: #{tpu_custom_call.1} parent=1 // pred_fallthru
      _
    // Predicated region
    $region14: #{tpu_custom_call.1} parent=1 // pred_check
      _
    $region15: #{tpu_custom_call.1} parent=1 // pred_check_branch
      %36 = sbr.rel (0) target = $region17
    $region16: #{tpu_custom_call.1} parent=1 // pred_region
      %37 = dma.done [#allocation4], 128
    $region17: #{tpu_custom_call.1} parent=1 // pred_fallthru
      _
    %38 = vsyncpa [#allocation3], 1
    %39 = vsyncpa [#allocation4], 1

</llo_original>
